<compile_context>
chip_gen: v7x
topology: tpu7x:2x2x1
jax: 0.10.0
libtpu: 0.0.40
codegen_flags: <defaults>
</compile_context>

<pallas_src>
import jax
import jax.numpy as jnp
import numpy as np
from jax.experimental import pallas as pl
from jax.experimental.pallas import tpu as pltpu

BN_EPS = 1e-5
LANE = 128


def _fusion_kernel(x_ref, w_ref, b_ref, o_ref):
    """Fused BatchNorm1d(training forward, affine=False) + Linear.

    x_ref: (N, F)      f32   concatenated activations
    w_ref: (F, O_pad)  f32   pre-transposed, lane-padded Linear weight
    b_ref: (1, O_pad)  f32   lane-padded bias
    o_ref: (N, O_pad)        output (lane-dense)
    """
    x = x_ref[...].astype(jnp.float32)

    # BatchNorm1d: per-feature batch mean and biased variance over the batch axis.
    mean = jnp.mean(x, axis=0, keepdims=True)
    centered = x - mean
    var = jnp.mean(centered * centered, axis=0, keepdims=True)
    x_norm = centered * jax.lax.rsqrt(var + BN_EPS)        # rsqrt -> EUP slot

    # Single fused K=F dot on the MXU (f32 operands, f32 accumulation); bias folded
    # into the epilogue add.  Lane-dense (N, 128) unmasked store.
    y = jnp.dot(x_norm, w_ref[...], preferred_element_type=jnp.float32) + b_ref[...]
    o_ref[...] = y.astype(o_ref.dtype)


def prepare_fusion_params(weight, bias, *, lane=LANE):
    """One-time parameter preparation (do at init, NOT per forward call).

    weight: (out_features, in_tensors*in_features)   -- PyTorch nn.Linear layout
    bias  : (out_features,)
    Returns:
      w_t  : (F, O_pad)  pre-transposed, zero-padded, f32
      b_pad: (1, O_pad)  zero-padded, f32
    """
    out_features, total_f = weight.shape
    o_pad = max(lane, pl.cdiv(out_features, lane) * lane)

    w_t = jnp.transpose(weight.astype(jnp.float32), (1, 0))          # (F, O)
    w_t = jnp.pad(w_t, ((0, 0), (0, o_pad - out_features)))          # (F, O_pad)

    b_pad = jnp.pad(bias.astype(jnp.float32),
                    (0, o_pad - out_features)).reshape(1, o_pad)
    return w_t, b_pad


def fusion_forward(tensors, w_t, b_pad, out_features):
    """Fused concat + BatchNorm1d(training forward, no affine) + Linear.

    tensors : list of (N, in_features) arrays (the module's forward input)
    w_t     : (F, O_pad) from prepare_fusion_params
    b_pad   : (1, O_pad) from prepare_fusion_params
    """
    # Concat in the wrapper: at this size it is a few KB and lets the kernel consume a
    # single dense operand (one DMA stream, one BN pass, one K=F dot).
    x = jnp.concatenate(tensors, axis=1).astype(jnp.float32)
    n, f = x.shape
    f_w, o_pad = w_t.shape
    assert f_w == f

    cost = pl.CostEstimate(
        flops=2 * n * f * o_pad + 6 * n * f,      # matmul + BN elementwise
        transcendentals=f,                        # rsqrt per feature
        bytes_accessed=4 * (n * f + f * o_pad + o_pad + n * o_pad),
    )

    out_pad = pl.pallas_call(
        _fusion_kernel,
        out_shape=jax.ShapeDtypeStruct((n, o_pad), jnp.float32),
        in_specs=[
            pl.BlockSpec((n, f), lambda: (0, 0)),
            pl.BlockSpec((f, o_pad), lambda: (0, 0)),
            pl.BlockSpec((1, o_pad), lambda: (0, 0)),
        ],
        out_specs=pl.BlockSpec((n, o_pad), lambda: (0, 0)),
        cost_estimate=cost,
    )(x, w_t, b_pad)

    return out_pad[:, :out_features]


def fusion_forward_ref(tensors, weight, bias):
    """Pure-JAX reference mirroring PyTorch training-mode forward (f32)."""
    x = jnp.concatenate(tensors, axis=1).astype(jnp.float32)
    mean = jnp.mean(x, axis=0, keepdims=True)
    var = jnp.mean((x - mean) ** 2, axis=0, keepdims=True)
    xn = (x - mean) / jnp.sqrt(var + BN_EPS)
    return xn @ weight.T.astype(jnp.float32) + bias.astype(jnp.float32)


if __name__ == "__main__":
    # Module config (small, consistent with the module's __init__).
    in_tensors = 3
    in_features = 16
    out_features = 32
    batch = 8
    F = in_tensors * in_features

    key = jax.random.PRNGKey(0)
    k_w, k_b, *k_inputs = jax.random.split(key, 2 + in_tensors)

    # Deterministic parameter init (Kaiming-uniform-ish bounds like nn.Linear).
    bound = 1.0 / np.sqrt(F)
    weight = jax.random.uniform(k_w, (out_features, F),
                                minval=-bound, maxval=bound, dtype=jnp.float32)
    bias = jax.random.uniform(k_b, (out_features,),
                              minval=-bound, maxval=bound, dtype=jnp.float32)

    # Forward takes a list/tuple of tensors, each (batch, in_features).
    tensors = [jax.random.normal(k, (batch, in_features), dtype=jnp.float32)
               for k in k_inputs]

    # One-time parameter prep: transpose + lane-pad (f32).
    w_t, b_pad = prepare_fusion_params(weight, bias)

    out = fusion_forward(tensors, w_t, b_pad, out_features)
    out = jax.block_until_ready(out)

    ref = fusion_forward_ref(tensors, weight, bias)
    # All-f32 math (MXU f32 accumulation) -> tight tolerance.
    np.testing.assert_allclose(np.asarray(out), np.asarray(ref), rtol=1e-4, atol=1e-4)

    print("KERNEL_OK")
</pallas_src>

<mosaic_0001>
module attributes {stable_mosaic.version = 11 : i64} {
  func.func @_fusion_kernel(%arg0: memref<8x48xf32, #tpu.memory_space<vmem>>, %arg1: memref<48x128xf32, #tpu.memory_space<vmem>>, %arg2: memref<1x128xf32, #tpu.memory_space<vmem>>, %arg3: memref<8x128xf32, #tpu.memory_space<vmem>>) attributes {dimension_semantics = [], scalar_prefetch = 0 : i64, scratch_operands = 0 : i64, tpu.core_type = #tpu.core_type<tc>} {
    %c0 = arith.constant 0 : index
    %c0_0 = arith.constant 0 : index
    %0 = vector.load %arg0[%c0, %c0_0] : memref<8x48xf32, #tpu.memory_space<vmem>>, vector<8x48xf32>
    %cst = arith.constant dense<0.000000e+00> : vector<48xf32>
    %1 = vector.multi_reduction <add>, %0, %cst [0] : vector<8x48xf32> to vector<48xf32>
    %2 = vector.shape_cast %1 : vector<48xf32> to vector<1x48xf32>
    %cst_1 = arith.constant 8.000000e+00 : f32
    %3 = vector.broadcast %cst_1 : f32 to vector<1x48xf32>
    %4 = arith.divf %2, %3 : vector<1x48xf32>
    %5 = vector.broadcast %4 : vector<1x48xf32> to vector<8x48xf32>
    %6 = arith.subf %0, %5 : vector<8x48xf32>
    %7 = arith.mulf %6, %6 : vector<8x48xf32>
    %cst_2 = arith.constant dense<0.000000e+00> : vector<48xf32>
    %8 = vector.multi_reduction <add>, %7, %cst_2 [0] : vector<8x48xf32> to vector<48xf32>
    %9 = vector.shape_cast %8 : vector<48xf32> to vector<1x48xf32>
    %cst_3 = arith.constant 8.000000e+00 : f32
    %10 = vector.broadcast %cst_3 : f32 to vector<1x48xf32>
    %11 = arith.divf %9, %10 : vector<1x48xf32>
    %cst_4 = arith.constant 9.99999974E-6 : f32
    %12 = vector.broadcast %cst_4 : f32 to vector<1x48xf32>
    %13 = arith.addf %11, %12 : vector<1x48xf32>
    %14 = math.rsqrt %13 : vector<1x48xf32>
    %15 = vector.broadcast %14 : vector<1x48xf32> to vector<8x48xf32>
    %16 = arith.mulf %6, %15 : vector<8x48xf32>
    %c0_5 = arith.constant 0 : index
    %c0_6 = arith.constant 0 : index
    %17 = vector.load %arg1[%c0_5, %c0_6] : memref<48x128xf32, #tpu.memory_space<vmem>>, vector<48x128xf32>
    %cst_7 = arith.constant dense<0.000000e+00> : vector<8x128xf32>
    %18 = tpu.matmul %16, %17, %cst_7 {dimension_numbers = #tpu.dot_dimension_numbers<[1], [0], [0], [1], [0, 0, 1, 1], [], []>} : vector<8x48xf32>, vector<48x128xf32>, vector<8x128xf32> -> vector<8x128xf32>
    %c0_8 = arith.constant 0 : index
    %c0_9 = arith.constant 0 : index
    %19 = vector.load %arg2[%c0_8, %c0_9] : memref<1x128xf32, #tpu.memory_space<vmem>>, vector<1x128xf32>
    %20 = vector.broadcast %19 : vector<1x128xf32> to vector<8x128xf32>
    %21 = arith.addf %18, %20 : vector<8x128xf32>
    %c0_10 = arith.constant 0 : index
    %c0_11 = arith.constant 0 : index
    %22 = vector.load %arg3[%c0_10, %c0_11] : memref<8x128xf32, #tpu.memory_space<vmem>>, vector<8x128xf32>
    tpu.vector_store %arg3[%c0_10, %c0_11], %21 {strides = array<i32>} : memref<8x128xf32, #tpu.memory_space<vmem>>, vector<8x128xf32>,
    return
  }
}

</mosaic_0001>

<llo_original>
// kernel: tpu_custom_call.1
$region0: #{tpu_custom_call.1}
  #allocation0 [shape = 'u32[]', space=smem, size = 0x4, offset = 0x4, fixed_abs, tag = 'smem constant byte address 0x4 - core index']
  #allocation1 [shape = 'u32[144,128]{1,0:T(1,128)}', space=vmem, size = 0x12000, scoped, tag = 'internal scratch']
  %s0 = inlined_call_operand.hbm [shape: f32[8,48], index: 0, kind: input, shape index: {}]
  %s1 = inlined_call_operand.hbm [shape: f32[48,128], index: 1, kind: input, shape index: {}]
  %s2 = inlined_call_operand.vmem [shape: f32[1,128], index: 2, kind: input, shape index: {}]
  %s3 = inlined_call_operand.hbm [shape: f32[8,128], index: 3, kind: output, shape index: {}]
  %s4 = sld [smem:[#allocation0]]
  $region30: #{tpu_custom_call.1} parent=0
    _
  %s6 = ssub.s32 1, %s4
  %s7 = scalar_select 0, %s6, %s4
  $region1: #{tpu_custom_call.1} parent=0
    #allocation2 [shape = 'u8[4096]{0}', space=vmem, size = 0x1000, scoped, tag = 'input window, operand 0, single buffered']
    #allocation3 [shape = 's32[1]{0}', space=sflag, size = 0x4, scoped, tag = 'scoped memory for tpu_custom_call.1']
    #allocation4 [shape = 's32[1]{0}', space=sflag, size = 0x4, scoped, tag = 'scoped memory for tpu_custom_call.1']
    #allocation5 [shape = 'u8[24576]{0}', space=vmem, size = 0x6000, scoped, tag = 'input window, operand 1, single buffered']
    #allocation6 [shape = 's32[1]{0}', space=sflag, size = 0x4, scoped, tag = 'scoped memory for tpu_custom_call.1']
    #allocation7 [shape = 'u8[4096]{0}', space=vmem, size = 0x1000, scoped, tag = 'output window, operand 0, single buffered']
    %8 = vsyncpa [#allocation3], 0
    %9 = vsyncpa [#allocation6], 0
    %10 = vsyncpa [#allocation4], 0
    // Predicated region
    $region2: #{tpu_custom_call.1} parent=1 // pred_check
      _
    $region3: #{tpu_custom_call.1} parent=1 // pred_check_branch
      %12 = sbr.rel (0) target = $region5
    $region4: #{tpu_custom_call.1} parent=1 // pred_region
      %s14 = ssub.s32 128, 128
      %15 = vsyncadd [#allocation3], %s14
      %s17 = sshll.u32 [#allocation2], 4
      %s18 = int_to_ptr.vmem [resolvable:$true] %s17
      %20 = dma.hbm_to_vmem [thread:$0]  %s0, 128, %s18, [#allocation3]
    $region5: #{tpu_custom_call.1} parent=1 // pred_fallthru
      _
    // Predicated region
    $region6: #{tpu_custom_call.1} parent=1 // pred_check
      _
    $region7: #{tpu_custom_call.1} parent=1 // pred_check_branch
      %22 = sbr.rel (0) target = $region9
    $region8: #{tpu_custom_call.1} parent=1 // pred_region
      %s24 = ssub.s32 768, 768
      %25 = vsyncadd [#allocation6], %s24
      %s26 = sshll.u32 [#allocation5], 4
      %s27 = int_to_ptr.vmem [resolvable:$true] %s26
      %32 = dma.hbm_to_vmem [thread:$0]  %s1, 768, %s27, [#allocation6], 128, 128, 8
    $region9: #{tpu_custom_call.1} parent=1 // pred_fallthru
      _
    // Predicated region
    $region10: #{tpu_custom_call.1} parent=1 // pred_check
      _
    $region11: #{tpu_custom_call.1} parent=1 // pred_check_branch
      %34 = sbr.rel (0) target = $region13
    $region12: #{tpu_custom_call.1} parent=1 // pred_region
      _
    $region13: #{tpu_custom_call.1} parent=1 // pred_fallthru
      _
    // Predicated region
    $region14: #{tpu_custom_call.1} parent=1 // pred_check
      _
    $region15: #{tpu_custom_call.1} parent=1 // pred_check_branch
      %36 = sbr.rel (0) target = $region17
    $region16: #{tpu_custom_call.1} parent=1 // pred_region
      %37 = dma.done [#allocation3], 128
    $region17: #{tpu_custom_call.1} parent=1 // pred_fallthru
      _
    // Predicated region
    $region18: #{tpu_custom_call.1} parent=1 // pred_check
      _
    $region19: #{tpu_custom_call.1} parent=1 // pred_check_branch
      %39 = sbr.rel (0) target = $region21
    $region20: #{tpu_custom_call.1} parent=1 // pred_region
      %40 = dma.done [#allocation6], 768
    $region21: #{tpu_custom_call.1} parent=1 // pred_fallthru
      _
    %v41 = vld [vmem:[#allocation2] sm:$0xff]
    %vm42 = vcmask 392192
    %v43 = vsel %vm42, %v41, 0.0
    %v44 = vrot.slane %v43, 4
    %v45 = vadd.f32 %v43, %v44
    %v46 = vrot.slane %v45, 2
    %v47 = vadd.f32 %v45, %v46
    %v48 = vrot.slane %v47, 1
    %v49 = vadd.f32 %v47, %v48
    %v50 = vrcp.pop 8.0
    %v51 = vmul.f32 %v49, %v50
    %v52 = vsub.f32 %v41, %v51
    %v53 = vmul.f32 %v52, %v52
    %v54 = vsel %vm42, %v53, 0.0
    %v55 = vrot.slane %v54, 4
    %v56 = vadd.f32 %v54, %v55
    %v57 = vrot.slane %v56, 2
    %v58 = vadd.f32 %v56, %v57
    %v59 = vrot.slane %v58, 1
    %v60 = vadd.f32 %v58, %v59
    %v61 = vmul.f32 %v60, %v50
    %v62 = vadd.f32 %v61, 1e-05
    %v63 = vrsqrt.pop %v62
    %v64 = vmul.f32 %v52, %v63
    %v65 = vld [vmem:[#allocation5] sm:$0xff]
    %v66 = vld [vmem:[#allocation5 + $0x8] sm:$0xff]
    %v67 = vld [vmem:[#allocation5 + $0x10] sm:$0xff]
    %v68 = vld [vmem:[#allocation5 + $0x18] sm:$0xff]
    %v69 = vld [vmem:[#allocation5 + $0x20] sm:$0xff]
    %v70 = vld [vmem:[#allocation5 + $0x28] sm:$0xff]
    %v71 = vld [vmem:[%s2] sm:$0x1]
    %v73 = vlaneseq
    %v74 = vshrl.u32 %v73, 7
    %v75 = vsub.s32 0, %v74
    %v76 = vrot.slane %v71, %v75
    %v79 = vsel %vm42, %v64, 0
    %81 = vmatprep.subr.mxu0 0.0
    %82 = vmatpush1.msra.mxu0 %v65
    %83 = vmatprep.subr.mxu0 0.0
    %84 = vmatpush1.msra.mxu0 %v66
    %85 = vmatprep.subr.mxu0 0.0
    %86 = vmatpush1.msra.mxu0 %v67
    %87 = vmatprep.subr.mxu0 0.0
    %88 = vmatpush1.msra.mxu0 %v68
    %89 = vmatprep.subr.mxu0 0.0
    %90 = vmatpush1.msra.mxu0 %v69
    %91 = vmatprep.subr.mxu0 0.0
    %92 = vmatpush1.msra.mxu0 %v70
    %93 = vmatprep.subr.mxu0 0.0
    %94 = vmatpush1.msra.mxu0 0.0
    %95 = vmatprep.subr.mxu0 0.0
    %96 = vmatpush1.msra.mxu0 0.0
    %97 = vmatprep.subr.mxu0 0.0
    %98 = vmatpush1.msra.mxu0 0.0
    %99 = vmatprep.subr.mxu0 0.0
    %100 = vmatpush1.msra.mxu0 0.0
    %101 = vmatprep.subr.mxu0 0.0
    %102 = vmatpush1.msra.mxu0 0.0
    %103 = vmatprep.subr.mxu0 0.0
    %104 = vmatpush1.msra.mxu0 0.0
    %105 = vmatprep.subr.mxu0 0.0
    %106 = vmatpush1.msra.mxu0 0.0
    %107 = vmatprep.subr.mxu0 0.0
    %108 = vmatpush1.msra.mxu0 0.0
    %109 = vmatprep.subr.mxu0 0.0
    %110 = vmatpush1.msra.mxu0 0.0
    %111 = vmatprep.subr.mxu0 0.0
    %112 = vmatpush1.msra.mxu0 0.0
    %113 = vmatprep.subr.mxu0 0.0
    %114 = vmatpush1.msra.mxu0 0.0
    %115 = vmatprep.subr.mxu0 0.0
    %116 = vmatpush1.msra.mxu0 0.0
    %117 = vmatprep.subr.mxu0 0.0
    %118 = vmatpush1.msra.mxu0 0.0
    %119 = vmatprep.subr.mxu0 0.0
    %120 = vmatpush1.msra.mxu0 0.0
    %121 = vmatprep.subr.mxu0 0.0
    %122 = vmatpush1.msra.mxu0 0.0
    %123 = vmatprep.subr.mxu0 0.0
    %124 = vmatpush1.msra.mxu0 0.0
    %125 = vmatprep.subr.mxu0 0.0
    %126 = vmatpush1.msra.mxu0 0.0
    %127 = vmatprep.subr.mxu0 0.0
    %128 = vmatpush1.msra.mxu0 0.0
    %129 = vmatprep.subr.mxu0 0.0
    %130 = vmatpush1.msra.mxu0 0.0
    %131 = vmatprep.subr.mxu0 0.0
    %132 = vmatpush1.msra.mxu0 0.0
    %133 = vmatprep.subr.mxu0 0.0
    %134 = vmatpush1.msra.mxu0 0.0
    %135 = vmatprep.subr.mxu0 0.0
    %136 = vmatpush1.msra.mxu0 0.0
    %137 = vmatprep.subr.mxu0 0.0
    %138 = vmatpush1.msra.mxu0 0.0
    %139 = vmatprep.subr.mxu0 0.0
    %140 = vmatpush1.msra.mxu0 0.0
    %141 = vmatprep.subr.mxu0 0.0
    %142 = vmatpush1.msra.mxu0 0.0
    %143 = vmatprep.subr.mxu0 0.0
    %144 = vmatpush1.msra.mxu0 0.0
    %145 = vmatprep.mubr.f32.mxu0 0.0
    %146 = vmatmul.mubr.f32.gmra.mrb[0].mxu0 %v79
    %v147 = vpop.f32.mrb[0].mxu0
    %v148 = vadd.f32 %v76, %v147
    %v149 = vpop.f32.mrb[0].mxu0
    %150 = vdwg.mxu0
    %151 = vst [vmem:[#allocation7] sm:$0xff] %v148
    // Predicated region
    $region22: #{tpu_custom_call.1} parent=1 // pred_check
      _
    $region23: #{tpu_custom_call.1} parent=1 // pred_check_branch
      %153 = sbr.rel (0) target = $region25
    $region24: #{tpu_custom_call.1} parent=1 // pred_region
      %s155 = ssub.s32 128, 128
      %156 = vsyncadd [#allocation4], %s155
      %s158 = sshll.u32 [#allocation7], 4
      %s159 = int_to_ptr.vmem [resolvable:$true] %s158
      %161 = dma.vmem_to_hbm [thread:$0]  %s159, 128, %s3, [#allocation4]
    $region25: #{tpu_custom_call.1} parent=1 // pred_fallthru
      _
    // Predicated region
    $region26: #{tpu_custom_call.1} parent=1 // pred_check
      _
    $region27: #{tpu_custom_call.1} parent=1 // pred_check_branch
      %163 = sbr.rel (0) target = $region29
    $region28: #{tpu_custom_call.1} parent=1 // pred_region
      %164 = dma.done [#allocation4], 128
    $region29: #{tpu_custom_call.1} parent=1 // pred_fallthru
      _
    %165 = vsyncpa [#allocation3], 1
    %166 = vsyncpa [#allocation6], 1
    %167 = vsyncpa [#allocation4], 1

</llo_original>
